<compile_context>
chip_gen: v5e
topology: v5e:2x2
jax: 0.10.0
libtpu: 0.0.40
codegen_flags: <defaults>
</compile_context>

<pallas_src>
import functools

import jax
import jax.numpy as jnp
from jax import lax
from jax.experimental import pallas as pl
from jax.experimental.pallas import tpu as pltpu


_VMEM_LIMIT = 32 * 1024 * 1024   # explicit scoped-VMEM budget (safe on v5e/v6e/v7x)
_TILE_BYTES = 4 * 1024 * 1024    # ~4 MiB f32 output tile target (x2 double buffer)
_TG_MAX = 8192                   # packed path: 8192 x 128 x 4 B = 4 MiB output tile
_MIN_GRID_STEPS = 8              # aim for >= 8 steps (megacore sharding + pipelining)


def _round_up(x: int, m: int) -> int:
    return ((x + m - 1) // m) * m


def _pick_row_tile(total_rows: int, max_rows: int) -> int:
    """Rows per block: multiple of 8 (or the full dim), <= max_rows, aiming for
    >= _MIN_GRID_STEPS grid steps to amortise per-step overhead and feed both
    v7x TensorCores."""
    if total_rows <= 8:
        return total_rows                              # single full-dim block
    tile = min(max_rows, _round_up(pl.cdiv(total_rows, _MIN_GRID_STEPS), 8))
    return max(8, tile)


def _one_hot_packed_kernel(x_ref, o_ref, *, C: int, R: int):
    """Small-C path (128 % C == 0): R = 128 // C rows packed per 128-lane row.

    x_ref: (TG, R) int32  -- the R consecutive flat-row indices of each lane group
    o_ref: (TG, 128) float32, lane-dense (full unmasked 128-lane stores)
    """
    TG = o_ref.shape[0]
    xv = x_ref[...]
    # In-kernel sanitize (jax.nn.one_hot semantics): out-of-range -> sentinel 128,
    # so after the +r*C shift it can never collide with a valid lane of any row.
    xs = jnp.where((xv >= 0) & (xv < C), xv, 128)
    offs = lax.broadcasted_iota(jnp.int32, (1, R), 1) * C      # one narrow pass
    shifted = xs + offs                                        # (TG, R)
    lanes = lax.broadcasted_iota(jnp.int32, (TG, 128), 1)
    # Hot flat-lane position of packed sub-row r is r*C + idx; positions are
    # disjoint across r for sanitized indices, so boolean OR == logical union.
    m = lanes == shifted[:, 0:1]
    for r in range(1, R):                                      # static unroll, R <= 64
        m = m | (lanes == shifted[:, r:r + 1])
    o_ref[...] = m.astype(jnp.float32)
    # TODO(synk): for large R (C <= 8) a log2(R) lane-gather/select tree would cut
    # the ~2R VALU ops/vreg further toward the HBM-write roofline.


def _one_hot_wide_kernel(x_ref, o_ref, *, TC: int):
    """C >= 128 path. x_ref: (TS, 1) int32 ; o_ref: (TS, TC) float32.

    No sanitize needed: out-of-range indices never match an in-bounds class
    column (any spurious match lands only on a masked OOB column of the ragged
    final class tile, which Pallas drops on writeback)."""
    TS = o_ref.shape[0]
    c0 = pl.program_id(1) * TC
    xm = x_ref[...] - c0                                        # narrow (TS,1) subtract
    classes = lax.broadcasted_iota(jnp.int32, (TS, TC), 1)      # loop-invariant iota
    o_ref[...] = (classes == xm).astype(jnp.float32)


def one_hot_encoding(x: jax.Array, num_categories: int, *,
                     force_kernel: bool = False) -> jax.Array:
    """One-hot encode integer indices x (any shape) -> (*x.shape, C) float32."""
    C = int(num_categories)
    out_shape = tuple(x.shape) + (C,)
    n = 1
    for d in x.shape:
        n *= int(d)
    if n == 0:
        return jnp.zeros(out_shape, jnp.float32)

    x_flat = x.reshape((n,)).astype(jnp.int32)

    # Tiny problems: per-step + launch overhead dominates; let XLA handle them.
    if not force_kernel and n * C * 4 < (1 << 20):
        return jax.nn.one_hot(x_flat, C, dtype=jnp.float32).reshape(out_shape)

    if C < 128 and 128 % C == 0:
        # ---------- packed small-C path: output (G, 128), lane-dense ----------
        R = 128 // C
        G = pl.cdiv(n, R)
        rem = n % R
        if rem:
            # Pad only the (tiny) index input; the output stays at its true size.
            x_flat = jnp.pad(x_flat, (0, R - rem))
        xk = x_flat.reshape((G, R))
        TG = _pick_row_tile(G, _TG_MAX)

        out = pl.pallas_call(
            functools.partial(_one_hot_packed_kernel, C=C, R=R),
            out_shape=jax.ShapeDtypeStruct((G, 128), jnp.float32),
            grid_spec=pltpu.PrefetchScalarGridSpec(
                num_scalar_prefetch=0,
                grid=(pl.cdiv(G, TG),),
                in_specs=[pl.BlockSpec((TG, R), lambda g: (g, 0))],
                out_specs=pl.BlockSpec((TG, 128), lambda g: (g, 0)),
            ),
            compiler_params=pltpu.CompilerParams(
                dimension_semantics=("parallel",),
                vmem_limit_bytes=_VMEM_LIMIT),
        )(xk)
        flat = out.reshape((G * R, C))            # free row-major view
        if rem:
            # TODO(synk): only remaining output copy; triggers iff n % (128//C) != 0.
            flat = flat[:n]
        return flat.reshape(out_shape)

    # ---------------- wide path: 2-D grid over (row tiles, class tiles) ----------
    # TODO(synk): C < 128 with 128 % C != 0 falls through here with TC = C
    # (masked lane stores); an lcm(C, 128)-wide packed variant would make it
    # lane-dense as well.
    if C < 128:
        TC = C
    else:
        TC = 128
        for cand in (1024, 512, 256):
            if C % cand == 0:
                TC = cand
                break
    ts_cap = max(8, (_TILE_BYTES // (4 * TC)) // 8 * 8)
    TS = _pick_row_tile(n, ts_cap)
    xk = x_flat.reshape((n, 1))                   # sublane-major index column (free view)

    out = pl.pallas_call(
        functools.partial(_one_hot_wide_kernel, TC=TC),
        out_shape=jax.ShapeDtypeStruct((n, C), jnp.float32),
        grid_spec=pltpu.PrefetchScalarGridSpec(
            num_scalar_prefetch=0,
            grid=(pl.cdiv(n, TS), pl.cdiv(C, TC)),
            in_specs=[pl.BlockSpec((TS, 1), lambda i, j: (i, 0))],
            out_specs=pl.BlockSpec((TS, TC), lambda i, j: (i, j)),
        ),
        compiler_params=pltpu.CompilerParams(
            dimension_semantics=("parallel", "parallel"),
            vmem_limit_bytes=_VMEM_LIMIT),
    )(xk)
    return out.reshape(out_shape)


if __name__ == "__main__":
    key = jax.random.PRNGKey(0)

    # Case 1: module-consistent small shape (B=2, S=8, C=16) -> packed path.
    num_categories = 16
    x1 = jax.random.randint(key, (2, 8), 0, num_categories, dtype=jnp.int32)
    out1 = jax.block_until_ready(
        one_hot_encoding(x1, num_categories, force_kernel=True))
    ref1 = jax.nn.one_hot(x1, num_categories, dtype=jnp.float32)
    assert out1.shape == (2, 8, num_categories)
    assert out1.dtype == jnp.float32
    assert jnp.array_equal(out1, ref1)

    # Small-problem dispatch (no force_kernel) must match too.
    out1b = jax.block_until_ready(one_hot_encoding(x1, num_categories))
    assert jnp.array_equal(out1b, ref1)

    # Case 2: packed path with a row remainder (n % (128 // C) != 0).
    x2 = jax.random.randint(jax.random.PRNGKey(1), (2, 37), 0, 16, dtype=jnp.int32)
    out2 = jax.block_until_ready(one_hot_encoding(x2, 16, force_kernel=True))
    assert jnp.array_equal(out2, jax.nn.one_hot(x2, 16, dtype=jnp.float32))

    # Case 3: wide path (C >= 128, lane-dense class tiles, multi-step row grid).
    x3 = jax.random.randint(jax.random.PRNGKey(2), (2, 64), 0, 256, dtype=jnp.int32)
    out3 = jax.block_until_ready(one_hot_encoding(x3, 256, force_kernel=True))
    assert jnp.array_equal(out3, jax.nn.one_hot(x3, 256, dtype=jnp.float32))

    # Case 4: wide path with a ragged (masked) final class tile (C % 128 != 0).
    x4 = jax.random.randint(jax.random.PRNGKey(3), (2, 40), 0, 200, dtype=jnp.int32)
    out4 = jax.block_until_ready(one_hot_encoding(x4, 200, force_kernel=True))
    assert jnp.array_equal(out4, jax.nn.one_hot(x4, 200, dtype=jnp.float32))

    # Case 5: out-of-range / negative indices -> all-zero rows (in-kernel sanitize).
    x5 = jnp.array([[0, 5, 15, -1, 16, 3, 2, 7],
                    [1, 100, -3, 0, 15, 4, 9, 11]], dtype=jnp.int32)
    out5 = jax.block_until_ready(one_hot_encoding(x5, 16, force_kernel=True))
    assert jnp.array_equal(out5, jax.nn.one_hot(x5, 16, dtype=jnp.float32))

    print("KERNEL_OK")
</pallas_src>

<mosaic_0001>
module attributes {stable_mosaic.version = 11 : i64} {
  func.func @_one_hot_packed_kernel(%arg0: i32, %arg1: memref<2x8xi32, #tpu.memory_space<vmem>>, %arg2: memref<2x128xf32, #tpu.memory_space<vmem>>) attributes {dimension_semantics = [#tpu.dimension_semantics<parallel>], iteration_bounds = array<i64: 1>, scalar_prefetch = 0 : i64, scratch_operands = 0 : i64, tpu.core_type = #tpu.core_type<tc>, window_params = [{transform_indices = @transform_0, window_bounds = array<i64: 2, 8>}, {transform_indices = @transform_1, window_bounds = array<i64: 2, 128>}]} {
    %c0 = arith.constant 0 : index
    %c0_0 = arith.constant 0 : index
    %0 = vector.load %arg1[%c0, %c0_0] : memref<2x8xi32, #tpu.memory_space<vmem>>, vector<2x8xi32>
    %c0_i32 = arith.constant 0 : i32
    %1 = vector.broadcast %c0_i32 : i32 to vector<2x8xi32>
    %2 = arith.cmpi sge, %0, %1 : vector<2x8xi32>
    %c16_i32 = arith.constant 16 : i32
    %3 = vector.broadcast %c16_i32 : i32 to vector<2x8xi32>
    %4 = arith.cmpi slt, %0, %3 : vector<2x8xi32>
    %5 = arith.andi %2, %4 : vector<2x8xi1>
    %c128_i32 = arith.constant 128 : i32
    %6 = vector.broadcast %c128_i32 : i32 to vector<2x8xi32>
    %7 = arith.select %5, %0, %6 : vector<2x8xi1>, vector<2x8xi32>
    %8 = tpu.iota {dimensions = array<i32: 1>} : vector<1x8xi32>
    %c16_i32_1 = arith.constant 16 : i32
    %9 = vector.broadcast %c16_i32_1 : i32 to vector<1x8xi32>
    %10 = arith.muli %8, %9 : vector<1x8xi32>
    %11 = vector.broadcast %10 : vector<1x8xi32> to vector<2x8xi32>
    %12 = arith.addi %7, %11 : vector<2x8xi32>
    %13 = tpu.iota {dimensions = array<i32: 1>} : vector<2x128xi32>
    %14 = vector.extract_strided_slice %12 {offsets = [0, 0], sizes = [2, 1], strides = [1, 1]} : vector<2x8xi32> to vector<2x1xi32>
    %15 = vector.broadcast %14 : vector<2x1xi32> to vector<2x128xi32>
    %16 = arith.cmpi eq, %13, %15 : vector<2x128xi32>
    %17 = vector.extract_strided_slice %12 {offsets = [0, 1], sizes = [2, 1], strides = [1, 1]} : vector<2x8xi32> to vector<2x1xi32>
    %18 = vector.broadcast %17 : vector<2x1xi32> to vector<2x128xi32>
    %19 = arith.cmpi eq, %13, %18 : vector<2x128xi32>
    %20 = arith.ori %16, %19 : vector<2x128xi1>
    %21 = vector.extract_strided_slice %12 {offsets = [0, 2], sizes = [2, 1], strides = [1, 1]} : vector<2x8xi32> to vector<2x1xi32>
    %22 = vector.broadcast %21 : vector<2x1xi32> to vector<2x128xi32>
    %23 = arith.cmpi eq, %13, %22 : vector<2x128xi32>
    %24 = arith.ori %20, %23 : vector<2x128xi1>
    %25 = vector.extract_strided_slice %12 {offsets = [0, 3], sizes = [2, 1], strides = [1, 1]} : vector<2x8xi32> to vector<2x1xi32>
    %26 = vector.broadcast %25 : vector<2x1xi32> to vector<2x128xi32>
    %27 = arith.cmpi eq, %13, %26 : vector<2x128xi32>
    %28 = arith.ori %24, %27 : vector<2x128xi1>
    %29 = vector.extract_strided_slice %12 {offsets = [0, 4], sizes = [2, 1], strides = [1, 1]} : vector<2x8xi32> to vector<2x1xi32>
    %30 = vector.broadcast %29 : vector<2x1xi32> to vector<2x128xi32>
    %31 = arith.cmpi eq, %13, %30 : vector<2x128xi32>
    %32 = arith.ori %28, %31 : vector<2x128xi1>
    %33 = vector.extract_strided_slice %12 {offsets = [0, 5], sizes = [2, 1], strides = [1, 1]} : vector<2x8xi32> to vector<2x1xi32>
    %34 = vector.broadcast %33 : vector<2x1xi32> to vector<2x128xi32>
    %35 = arith.cmpi eq, %13, %34 : vector<2x128xi32>
    %36 = arith.ori %32, %35 : vector<2x128xi1>
    %37 = vector.extract_strided_slice %12 {offsets = [0, 6], sizes = [2, 1], strides = [1, 1]} : vector<2x8xi32> to vector<2x1xi32>
    %38 = vector.broadcast %37 : vector<2x1xi32> to vector<2x128xi32>
    %39 = arith.cmpi eq, %13, %38 : vector<2x128xi32>
    %40 = arith.ori %36, %39 : vector<2x128xi1>
    %41 = vector.extract_strided_slice %12 {offsets = [0, 7], sizes = [2, 1], strides = [1, 1]} : vector<2x8xi32> to vector<2x1xi32>
    %42 = vector.broadcast %41 : vector<2x1xi32> to vector<2x128xi32>
    %43 = arith.cmpi eq, %13, %42 : vector<2x128xi32>
    %44 = arith.ori %40, %43 : vector<2x128xi1>
    %45 = arith.extui %44 : vector<2x128xi1> to vector<2x128xi32>
    %46 = arith.sitofp %45 : vector<2x128xi32> to vector<2x128xf32>
    %c0_2 = arith.constant 0 : index
    %c0_3 = arith.constant 0 : index
    %47 = vector.load %arg2[%c0_2, %c0_3] : memref<2x128xf32, #tpu.memory_space<vmem>>, vector<2x128xf32>
    tpu.vector_store %arg2[%c0_2, %c0_3], %46 {strides = array<i32>} : memref<2x128xf32, #tpu.memory_space<vmem>>, vector<2x128xf32>,
    return
  }
  func.func @transform_0(%arg0: i32) -> (i32, i32) {
    %c0_i32 = arith.constant 0 : i32
    %c0_i32_0 = arith.constant 0 : i32
    return %arg0, %c0_i32 : i32, i32
  }
  func.func @transform_1(%arg0: i32) -> (i32, i32) {
    %c0_i32 = arith.constant 0 : i32
    %c0_i32_0 = arith.constant 0 : i32
    return %arg0, %c0_i32 : i32, i32
  }
}

</mosaic_0001>

<llo_original>
// kernel: tpu_custom_call.1
$region0: #{tpu_custom_call.1}
  #allocation0 [shape = 'u32[]', space=smem, size = 0x4, offset = 0x4, fixed_abs, tag = 'smem constant byte address 0x4 - core index']
  #allocation1 [shape = 'u32[72,128]{1,0:T(1,128)}', space=vmem, size = 0x9000, scoped, tag = 'internal scratch']
  %s0 = inlined_call_operand.hbm [shape: s32[2,8], index: 0, kind: input, shape index: {}]
  %s1 = inlined_call_operand.hbm [shape: f32[2,128], index: 1, kind: output, shape index: {}]
  %s2 = sld [smem:[#allocation0]]
  $region18: #{tpu_custom_call.1} parent=0
    _
  %s4 = ssub.s32 1, %s2
  %s5 = scalar_select 0, %s4, %s2
  $region1: #{tpu_custom_call.1} parent=0
    #allocation2 [shape = 'u8[1024]{0}', space=vmem, size = 0x400, scoped, tag = 'input window, operand 0, single buffered']
    #allocation3 [shape = 's32[1]{0}', space=sflag, size = 0x4, scoped, tag = 'scoped memory for tpu_custom_call.1']
    #allocation4 [shape = 's32[1]{0}', space=sflag, size = 0x4, scoped, tag = 'scoped memory for tpu_custom_call.1']
    #allocation5 [shape = 'u8[1024]{0}', space=vmem, size = 0x400, scoped, tag = 'output window, operand 0, single buffered']
    %6 = vsyncpa [#allocation3], 0
    %7 = vsyncpa [#allocation4], 0
    // Predicated region
    $region2: #{tpu_custom_call.1} parent=1 // pred_check
      _
    $region3: #{tpu_custom_call.1} parent=1 // pred_check_branch
      %9 = sbr.rel (0) target = $region5
    $region4: #{tpu_custom_call.1} parent=1 // pred_region
      %11 = vsyncadd [#allocation3], 0
      %s13 = sshll.u32 %s0, 4
      %s14 = int_to_ptr.hbm [resolvable:$true] %s13
      %s15 = sshll.u32 [#allocation2], 4
      %s16 = int_to_ptr.vmem [resolvable:$true] %s15
      %18 = dma.hbm_to_vmem [thread:$0]  %s14, 32, %s16, [#allocation3]
    $region5: #{tpu_custom_call.1} parent=1 // pred_fallthru
      _
    // Predicated region
    $region6: #{tpu_custom_call.1} parent=1 // pred_check
      _
    $region7: #{tpu_custom_call.1} parent=1 // pred_check_branch
      %20 = sbr.rel (0) target = $region9
    $region8: #{tpu_custom_call.1} parent=1 // pred_region
      %22 = dma.done [#allocation3], 32
    $region9: #{tpu_custom_call.1} parent=1 // pred_fallthru
      _
    %v23 = vld [vmem:[#allocation2] sm:$0x3]
    %vm24 = vcmp.ge.s32.totalorder %v23, 0
    %vm25 = vcmp.lt.s32.totalorder %v23, 16
    %vm26 = vmand %vm24, %vm25
    %v27 = vsel %vm26, %v23, 128
    %v28 = vlaneseq
    %v29 = vand.u32 %v28, 127
    %v30 = vmul.u32 %v29, 16
    %v31 = vadd.s32 %v27, %v30
    %32 = vset.pattern.permute.xlu0 0
    %33 = vperm.xlu0 %32, %v31
    %v34 = vpop.permute.xlu0 %33
    %vm35 = vcmp.eq.s32.totalorder %v29, %v34
    %36 = vset.pattern.permute.xlu0 1
    %37 = vperm.xlu0 %36, %v31
    %v38 = vpop.permute.xlu0 %37
    %vm39 = vcmp.eq.s32.totalorder %v29, %v38
    %vm40 = vmor %vm35, %vm39
    %41 = vset.pattern.permute.xlu0 2
    %42 = vperm.xlu0 %41, %v31
    %v43 = vpop.permute.xlu0 %42
    %vm44 = vcmp.eq.s32.totalorder %v29, %v43
    %vm45 = vmor %vm40, %vm44
    %46 = vset.pattern.permute.xlu0 3
    %47 = vperm.xlu0 %46, %v31
    %v48 = vpop.permute.xlu0 %47
    %vm49 = vcmp.eq.s32.totalorder %v29, %v48
    %vm50 = vmor %vm45, %vm49
    %51 = vset.pattern.permute.xlu0 4
    %52 = vperm.xlu0 %51, %v31
    %v53 = vpop.permute.xlu0 %52
    %vm54 = vcmp.eq.s32.totalorder %v29, %v53
    %vm55 = vmor %vm50, %vm54
    %56 = vset.pattern.permute.xlu0 5
    %57 = vperm.xlu0 %56, %v31
    %v58 = vpop.permute.xlu0 %57
    %vm59 = vcmp.eq.s32.totalorder %v29, %v58
    %vm60 = vmor %vm55, %vm59
    %61 = vset.pattern.permute.xlu0 6
    %62 = vperm.xlu0 %61, %v31
    %v63 = vpop.permute.xlu0 %62
    %vm64 = vcmp.eq.s32.totalorder %v29, %v63
    %vm65 = vmor %vm60, %vm64
    %66 = vset.pattern.permute.xlu0 7
    %67 = vperm.xlu0 %66, %v31
    %v68 = vpop.permute.xlu0 %67
    %vm69 = vcmp.eq.s32.totalorder %v29, %v68
    %vm70 = vmor %vm65, %vm69
    %v71 = vsel %vm70, 1, 0
    %v72 = vcvt.s32.f32 %v71
    %73 = vst [vmem:[#allocation5] sm:$0x3] %v72
    // Predicated region
    $region10: #{tpu_custom_call.1} parent=1 // pred_check
      _
    $region11: #{tpu_custom_call.1} parent=1 // pred_check_branch
      %75 = sbr.rel (0) target = $region13
    $region12: #{tpu_custom_call.1} parent=1 // pred_region
      %77 = vsyncadd [#allocation4], 0
      %s79 = sshll.u32 [#allocation5], 4
      %s80 = int_to_ptr.vmem [resolvable:$true] %s79
      %s81 = sshll.u32 %s1, 4
      %s82 = int_to_ptr.hbm [resolvable:$true] %s81
      %84 = dma.vmem_to_hbm [thread:$0]  %s80, 32, %s82, [#allocation4]
    $region13: #{tpu_custom_call.1} parent=1 // pred_fallthru
      _
    // Predicated region
    $region14: #{tpu_custom_call.1} parent=1 // pred_check
      _
    $region15: #{tpu_custom_call.1} parent=1 // pred_check_branch
      %86 = sbr.rel (0) target = $region17
    $region16: #{tpu_custom_call.1} parent=1 // pred_region
      %88 = dma.done [#allocation4], 32
    $region17: #{tpu_custom_call.1} parent=1 // pred_fallthru
      _
    %89 = vsyncpa [#allocation3], 1
    %90 = vsyncpa [#allocation4], 1

</llo_original>
